<compile_context>
chip_gen: v7x
topology: tpu7x:2x2x1
jax: 0.10.0
libtpu: 0.0.40
codegen_flags: <defaults>
</compile_context>

<pallas_src>
import functools

import jax
import jax.numpy as jnp
from jax.experimental import pallas as pl
from jax.experimental.pallas import tpu as pltpu


def adalin_kernel(x_ref, p_ref, o_ref, *, eps):
    # x block: (TB, C, HW); params block: (TB, C, 3) packed as [rho, gamma, beta].
    x = x_ref[...].astype(jnp.float32)
    p = p_ref[...].astype(jnp.float32)

    tb, c, hw = x.shape
    n_in = float(hw)
    n_ln = float(c * hw)

    rho = p[:, :, 0:1]                                    # (TB, C, 1)
    gamma = p[:, :, 1:2]                                  # (TB, C, 1)
    beta = p[:, :, 2:3]                                   # (TB, C, 1)

    # ---- per-(sample, channel) partials: sum and centered sum-of-squared-devs ----
    row_sum = jnp.sum(x, axis=2, keepdims=True)           # (TB, C, 1)
    in_mean = row_sum * (1.0 / n_in)                      # (TB, C, 1)
    xc = x - in_mean
    in_ssd = jnp.sum(xc * xc, axis=2, keepdims=True)      # (TB, C, 1)
    in_var = in_ssd * (1.0 / (n_in - 1.0))                # unbiased (N-1)

    # ---- per-sample layer stats derived from the per-channel partials ----
    ln_mean = jnp.sum(row_sum, axis=1, keepdims=True) * (1.0 / n_ln)     # (TB,1,1)
    dm = in_mean - ln_mean                                               # (TB,C,1)
    ln_ssd = jnp.sum(in_ssd + n_in * dm * dm, axis=1, keepdims=True)     # (TB,1,1)
    ln_var = ln_ssd * (1.0 / (n_ln - 1.0))                # unbiased (N-1)

    in_rstd = jax.lax.rsqrt(in_var + eps)                 # (TB, C, 1) — EUP
    ln_rstd = jax.lax.rsqrt(ln_var + eps)                 # (TB, 1, 1) — EUP

    # ---- fused per-(b,c) scale / shift:  o = x * scale + shift ----
    w_in = rho * in_rstd                                  # (TB, C, 1)
    w_ln = (1.0 - rho) * ln_rstd                          # (TB, C, 1)
    scale = gamma * (w_in + w_ln)
    shift = beta - gamma * (w_in * in_mean + w_ln * ln_mean)

    o_ref[...] = (x * scale + shift).astype(o_ref.dtype)


def _pick_tb(b, c, hw, itemsize, target_bytes, min_bytes=256 * 1024):
    """Largest divisor of b whose x tile fits target_bytes; prefer grid >= 2
    (keeps both megacore TCs busy) when the tile is still reasonably large."""
    divs = [t for t in range(1, b + 1) if b % t == 0]
    fits = [t for t in divs if t * c * hw * itemsize <= target_bytes]
    if not fits:
        return 1
    multi = [t for t in fits if b // t >= 2 and t * c * hw * itemsize >= min_bytes]
    return max(multi) if multi else max(fits)


def adalin(x, rho, gamma, beta, eps=1e-5, tile_bytes=2 * 1024 * 1024):
    """x: (B, C, H, W); rho: (1, C, 1, 1); gamma/beta: (B, C)."""
    B, C, H, W = x.shape
    HW = H * W
    x3 = x.reshape(B, C, HW)                              # free (contiguous) reshape

    # Pack the three tiny side inputs into one lane-adjacent array: (B, C, 3).
    rho_bc = jnp.broadcast_to(rho.reshape(1, C), (B, C)).astype(jnp.float32)
    params = jnp.stack(
        [rho_bc, gamma.astype(jnp.float32), beta.astype(jnp.float32)], axis=-1
    )                                                     # (B, C, 3)

    itemsize = jnp.dtype(x.dtype).itemsize
    TB = _pick_tb(B, C, HW, itemsize, target_bytes=tile_bytes)
    grid = (B // TB,)

    out = pl.pallas_call(
        functools.partial(adalin_kernel, eps=float(eps)),
        out_shape=jax.ShapeDtypeStruct((B, C, HW), x.dtype),
        grid=grid,
        in_specs=[
            pl.BlockSpec((TB, C, HW), lambda i: (i, 0, 0)),   # x tile
            pl.BlockSpec((TB, C, 3), lambda i: (i, 0, 0)),    # packed rho/gamma/beta
        ],
        out_specs=pl.BlockSpec((TB, C, HW), lambda i: (i, 0, 0)),
        compiler_params=pltpu.CompilerParams(
            dimension_semantics=("parallel",),
        ),
    )(x3, params)
    return out.reshape(B, C, H, W)


def adalin_ref(x, rho, gamma, beta, eps=1e-5):
    """Pure-JAX reference mirroring the PyTorch forward (unbiased var)."""
    in_mean = jnp.mean(x, axis=(2, 3), keepdims=True)
    in_var = jnp.var(x, axis=(2, 3), keepdims=True, ddof=1)
    out_in = (x - in_mean) / jnp.sqrt(in_var + eps)
    ln_mean = jnp.mean(x, axis=(1, 2, 3), keepdims=True)
    ln_var = jnp.var(x, axis=(1, 2, 3), keepdims=True, ddof=1)
    out_ln = (x - ln_mean) / jnp.sqrt(ln_var + eps)
    out = rho * out_in + (1.0 - rho) * out_ln
    return out * gamma[:, :, None, None] + beta[:, :, None, None]


if __name__ == "__main__":
    base_key = jax.random.PRNGKey(0)

    def run_case(case_idx, B, C, H, W, tile_bytes=2 * 1024 * 1024):
        key = jax.random.fold_in(base_key, case_idx)
        kx, kg, kb = jax.random.split(key, 3)
        x = jax.random.normal(kx, (B, C, H, W), dtype=jnp.float32)
        gamma = jax.random.normal(kg, (B, C), dtype=jnp.float32)
        beta = jax.random.normal(kb, (B, C), dtype=jnp.float32)
        # rho initialized to 0.9 as in the PyTorch module __init__.
        rho = jnp.full((1, C, 1, 1), 0.9, dtype=jnp.float32)

        out = jax.block_until_ready(adalin(x, rho, gamma, beta, tile_bytes=tile_bytes))
        ref = adalin_ref(x, rho, gamma, beta)
        assert out.shape == (B, C, H, W)
        assert jnp.allclose(out, ref, atol=1e-4, rtol=1e-4), f"mismatch {B, C, H, W}"

    # Module-consistent toy shape (whole batch in one grid step).
    run_case(0, 2, 4, 16, 16)
    # Second shape: small tile budget forces a multi-step grid (TB < B).
    run_case(1, 4, 8, 8, 8, tile_bytes=4096)

    print("KERNEL_OK")
</pallas_src>

<mosaic_0001>
module attributes {stable_mosaic.version = 11 : i64} {
  func.func @adalin_kernel(%arg0: i32, %arg1: memref<2x4x256xf32, #tpu.memory_space<vmem>>, %arg2: memref<2x4x3xf32, #tpu.memory_space<vmem>>, %arg3: memref<2x4x256xf32, #tpu.memory_space<vmem>>) attributes {dimension_semantics = [#tpu.dimension_semantics<parallel>], iteration_bounds = array<i64: 1>, scalar_prefetch = 0 : i64, scratch_operands = 0 : i64, tpu.core_type = #tpu.core_type<tc>, window_params = [{transform_indices = @transform_0, window_bounds = array<i64: 2, 4, 256>}, {transform_indices = @transform_1, window_bounds = array<i64: 2, 4, 3>}, {transform_indices = @transform_2, window_bounds = array<i64: 2, 4, 256>}]} {
    %c0 = arith.constant 0 : index
    %c0_0 = arith.constant 0 : index
    %c0_1 = arith.constant 0 : index
    %0 = vector.load %arg1[%c0, %c0_0, %c0_1] : memref<2x4x256xf32, #tpu.memory_space<vmem>>, vector<2x4x256xf32>
    %c0_2 = arith.constant 0 : index
    %c0_3 = arith.constant 0 : index
    %c0_4 = arith.constant 0 : index
    %1 = vector.load %arg2[%c0_2, %c0_3, %c0_4] : memref<2x4x3xf32, #tpu.memory_space<vmem>>, vector<2x4x3xf32>
    %2 = vector.extract_strided_slice %1 {offsets = [0, 0, 0], sizes = [2, 4, 1], strides = [1, 1, 1]} : vector<2x4x3xf32> to vector<2x4x1xf32>
    %3 = vector.extract_strided_slice %1 {offsets = [0, 0, 1], sizes = [2, 4, 1], strides = [1, 1, 1]} : vector<2x4x3xf32> to vector<2x4x1xf32>
    %4 = vector.extract_strided_slice %1 {offsets = [0, 0, 2], sizes = [2, 4, 1], strides = [1, 1, 1]} : vector<2x4x3xf32> to vector<2x4x1xf32>
    %cst = arith.constant dense<0.000000e+00> : vector<2x4xf32>
    %5 = vector.multi_reduction <add>, %0, %cst [2] : vector<2x4x256xf32> to vector<2x4xf32>
    %6 = vector.shape_cast %5 : vector<2x4xf32> to vector<2x4x1xf32>
    %cst_5 = arith.constant 3.906250e-03 : f32
    %7 = vector.broadcast %cst_5 : f32 to vector<2x4x1xf32>
    %8 = arith.mulf %6, %7 : vector<2x4x1xf32>
    %9 = vector.broadcast %8 : vector<2x4x1xf32> to vector<2x4x256xf32>
    %10 = arith.subf %0, %9 : vector<2x4x256xf32>
    %11 = arith.mulf %10, %10 : vector<2x4x256xf32>
    %cst_6 = arith.constant dense<0.000000e+00> : vector<2x4xf32>
    %12 = vector.multi_reduction <add>, %11, %cst_6 [2] : vector<2x4x256xf32> to vector<2x4xf32>
    %13 = vector.shape_cast %12 : vector<2x4xf32> to vector<2x4x1xf32>
    %cst_7 = arith.constant 0.00392156886 : f32
    %14 = vector.broadcast %cst_7 : f32 to vector<2x4x1xf32>
    %15 = arith.mulf %13, %14 : vector<2x4x1xf32>
    %cst_8 = arith.constant dense<0.000000e+00> : vector<2x1xf32>
    %16 = vector.multi_reduction <add>, %6, %cst_8 [1] : vector<2x4x1xf32> to vector<2x1xf32>
    %17 = vector.shape_cast %16 : vector<2x1xf32> to vector<2x1x1xf32>
    %cst_9 = arith.constant 9.765625E-4 : f32
    %18 = vector.broadcast %cst_9 : f32 to vector<2x1x1xf32>
    %19 = arith.mulf %17, %18 : vector<2x1x1xf32>
    %20 = vector.broadcast %19 : vector<2x1x1xf32> to vector<2x4x1xf32>
    %21 = arith.subf %8, %20 : vector<2x4x1xf32>
    %cst_10 = arith.constant 2.560000e+02 : f32
    %22 = vector.broadcast %cst_10 : f32 to vector<2x4x1xf32>
    %23 = arith.mulf %22, %21 : vector<2x4x1xf32>
    %24 = arith.mulf %23, %21 : vector<2x4x1xf32>
    %25 = arith.addf %13, %24 : vector<2x4x1xf32>
    %cst_11 = arith.constant dense<0.000000e+00> : vector<2x1xf32>
    %26 = vector.multi_reduction <add>, %25, %cst_11 [1] : vector<2x4x1xf32> to vector<2x1xf32>
    %27 = vector.shape_cast %26 : vector<2x1xf32> to vector<2x1x1xf32>
    %cst_12 = arith.constant 9.77517105E-4 : f32
    %28 = vector.broadcast %cst_12 : f32 to vector<2x1x1xf32>
    %29 = arith.mulf %27, %28 : vector<2x1x1xf32>
    %cst_13 = arith.constant 9.99999974E-6 : f32
    %30 = vector.broadcast %cst_13 : f32 to vector<2x4x1xf32>
    %31 = arith.addf %15, %30 : vector<2x4x1xf32>
    %32 = math.rsqrt %31 : vector<2x4x1xf32>
    %cst_14 = arith.constant 9.99999974E-6 : f32
    %33 = vector.broadcast %cst_14 : f32 to vector<2x1x1xf32>
    %34 = arith.addf %29, %33 : vector<2x1x1xf32>
    %35 = math.rsqrt %34 : vector<2x1x1xf32>
    %36 = arith.mulf %2, %32 : vector<2x4x1xf32>
    %cst_15 = arith.constant 1.000000e+00 : f32
    %37 = vector.broadcast %cst_15 : f32 to vector<2x4x1xf32>
    %38 = arith.subf %37, %2 : vector<2x4x1xf32>
    %39 = vector.broadcast %35 : vector<2x1x1xf32> to vector<2x4x1xf32>
    %40 = arith.mulf %38, %39 : vector<2x4x1xf32>
    %41 = arith.addf %36, %40 : vector<2x4x1xf32>
    %42 = arith.mulf %3, %41 : vector<2x4x1xf32>
    %43 = arith.mulf %36, %8 : vector<2x4x1xf32>
    %44 = vector.broadcast %19 : vector<2x1x1xf32> to vector<2x4x1xf32>
    %45 = arith.mulf %40, %44 : vector<2x4x1xf32>
    %46 = arith.addf %43, %45 : vector<2x4x1xf32>
    %47 = arith.mulf %3, %46 : vector<2x4x1xf32>
    %48 = arith.subf %4, %47 : vector<2x4x1xf32>
    %49 = vector.broadcast %42 : vector<2x4x1xf32> to vector<2x4x256xf32>
    %50 = arith.mulf %0, %49 : vector<2x4x256xf32>
    %51 = vector.broadcast %48 : vector<2x4x1xf32> to vector<2x4x256xf32>
    %52 = arith.addf %50, %51 : vector<2x4x256xf32>
    %c0_16 = arith.constant 0 : index
    %c0_17 = arith.constant 0 : index
    %c0_18 = arith.constant 0 : index
    %53 = vector.load %arg3[%c0_16, %c0_17, %c0_18] : memref<2x4x256xf32, #tpu.memory_space<vmem>>, vector<2x4x256xf32>
    tpu.vector_store %arg3[%c0_16, %c0_17, %c0_18], %52 {strides = array<i32>} : memref<2x4x256xf32, #tpu.memory_space<vmem>>, vector<2x4x256xf32>,
    return
  }
  func.func @transform_0(%arg0: i32) -> (i32, i32, i32) {
    %c0_i32 = arith.constant 0 : i32
    %c0_i32_0 = arith.constant 0 : i32
    %c0_i32_1 = arith.constant 0 : i32
    return %arg0, %c0_i32, %c0_i32_0 : i32, i32, i32
  }
  func.func @transform_1(%arg0: i32) -> (i32, i32, i32) {
    %c0_i32 = arith.constant 0 : i32
    %c0_i32_0 = arith.constant 0 : i32
    %c0_i32_1 = arith.constant 0 : i32
    return %arg0, %c0_i32, %c0_i32_0 : i32, i32, i32
  }
  func.func @transform_2(%arg0: i32) -> (i32, i32, i32) {
    %c0_i32 = arith.constant 0 : i32
    %c0_i32_0 = arith.constant 0 : i32
    %c0_i32_1 = arith.constant 0 : i32
    return %arg0, %c0_i32, %c0_i32_0 : i32, i32, i32
  }
}

</mosaic_0001>

<llo_original>
// kernel: tpu_custom_call.1
$region0: #{tpu_custom_call.1}
  #allocation0 [shape = 'u32[]', space=smem, size = 0x4, offset = 0x4, fixed_abs, tag = 'smem constant byte address 0x4 - core index']
  #allocation1 [shape = 'u32[144,128]{1,0:T(1,128)}', space=vmem, size = 0x12000, scoped, tag = 'internal scratch']
  %s0 = inlined_call_operand.hbm [shape: f32[2,4,256], index: 0, kind: input, shape index: {}]
  %s1 = inlined_call_operand.vmem [shape: f32[2,4,3], index: 1, kind: input, shape index: {}]
  %s2 = inlined_call_operand.hbm [shape: f32[2,4,256], index: 2, kind: output, shape index: {}]
  %s3 = sld [smem:[#allocation0]]
  $region22: #{tpu_custom_call.1} parent=0
    _
  %s5 = ssub.s32 1, %s3
  %s6 = scalar_select 0, %s5, %s3
  $region1: #{tpu_custom_call.1} parent=0
    #allocation2 [shape = 'u8[8192]{0}', space=vmem, size = 0x2000, scoped, tag = 'input window, operand 0, single buffered']
    #allocation3 [shape = 's32[1]{0}', space=sflag, size = 0x4, scoped, tag = 'scoped memory for tpu_custom_call.1']
    #allocation4 [shape = 's32[1]{0}', space=sflag, size = 0x4, scoped, tag = 'scoped memory for tpu_custom_call.1']
    #allocation5 [shape = 'u8[8192]{0}', space=vmem, size = 0x2000, scoped, tag = 'output window, operand 0, single buffered']
    %7 = vsyncpa [#allocation3], 0
    %8 = vsyncpa [#allocation4], 0
    // Predicated region
    $region2: #{tpu_custom_call.1} parent=1 // pred_check
      _
    $region3: #{tpu_custom_call.1} parent=1 // pred_check_branch
      %10 = sbr.rel (0) target = $region5
    $region4: #{tpu_custom_call.1} parent=1 // pred_region
      %s12 = ssub.s32 256, 256
      %13 = vsyncadd [#allocation3], %s12
      %s14 = sshll.u32 [#allocation2], 4
      %s15 = int_to_ptr.vmem [resolvable:$true] %s14
      %20 = dma.hbm_to_vmem [thread:$0]  %s0, 256, %s15, [#allocation3], 128, 128, 8
    $region5: #{tpu_custom_call.1} parent=1 // pred_fallthru
      _
    // Predicated region
    $region6: #{tpu_custom_call.1} parent=1 // pred_check
      _
    $region7: #{tpu_custom_call.1} parent=1 // pred_check_branch
      %22 = sbr.rel (0) target = $region9
    $region8: #{tpu_custom_call.1} parent=1 // pred_region
      _
    $region9: #{tpu_custom_call.1} parent=1 // pred_fallthru
      _
    // Predicated region
    $region10: #{tpu_custom_call.1} parent=1 // pred_check
      _
    $region11: #{tpu_custom_call.1} parent=1 // pred_check_branch
      %24 = sbr.rel (0) target = $region13
    $region12: #{tpu_custom_call.1} parent=1 // pred_region
      %25 = dma.done [#allocation3], 256
    $region13: #{tpu_custom_call.1} parent=1 // pred_fallthru
      _
    %v26 = vld [vmem:[#allocation2] sm:$0xff]
    %v27 = vld [vmem:[#allocation2 + $0x8] sm:$0xff]
    %v28 = vld [vmem:[%s1] sm:$0xf]
    %v29 = vld [vmem:[%s1 + $0x4] sm:$0xf]
    %v32 = vcombine.high %v26, %v26
    %v33 = vcombine.high %v27, %v27
    %vm36 = vcmask 1043456
    %v37 = vsel %vm36, %v26, 0.0
    %v38 = vsel %vm36, %v32, 0.0
    %v39 = vadd.f32 %v37, %v38
    %40 = vadd.xlane.f32.xlu0 %v39
    %v41 = vpop.xlane.xlu0 %40
    %v42 = vsel %vm36, %v27, 0.0
    %v43 = vsel %vm36, %v33, 0.0
    %v44 = vadd.f32 %v42, %v43
    %45 = vadd.xlane.f32.xlu0 %v44
    %v46 = vpop.xlane.xlu0 %45
    %v47 = vmul.f32 %v41, 0.00390625
    %v48 = vmul.f32 %v46, 0.00390625
    %v52 = vunpack.c.l.s4 839922192
    %v53 = vunpack.c.0.s8 %v52
    %v54 = vlaneseq
    %v55 = vshrl.u32 %v54, 7
    %v56 = vsub.s32 %v53, %v55
    %v57 = vrot.slane %v47, %v56
    %v59 = vunpack.c.l.s4 839922192
    %v60 = vunpack.c.0.s8 %v59
    %v61 = vlaneseq
    %v62 = vshrl.u32 %v61, 7
    %v63 = vsub.s32 %v60, %v62
    %v64 = vrot.slane %v48, %v63
    %v67 = vsub.f32 %v26, %v57
    %v68 = vsub.f32 %v27, %v64
    %v69 = vmul.f32 %v67, %v67
    %v70 = vmul.f32 %v68, %v68
    %v73 = vcombine.high %v69, %v69
    %v74 = vcombine.high %v70, %v70
    %v77 = vsel %vm36, %v69, 0.0
    %v78 = vsel %vm36, %v73, 0.0
    %v79 = vadd.f32 %v77, %v78
    %80 = vadd.xlane.f32.xlu0 %v79
    %v81 = vpop.xlane.xlu0 %80
    %v82 = vsel %vm36, %v70, 0.0
    %v83 = vsel %vm36, %v74, 0.0
    %v84 = vadd.f32 %v82, %v83
    %85 = vadd.xlane.f32.xlu0 %v84
    %v86 = vpop.xlane.xlu0 %85
    %v87 = vmul.f32 %v81, 0.003921569
    %v88 = vmul.f32 %v86, 0.003921569
    %v89 = vsel %vm36, %v41, 0.0
    %v90 = vrot.slane %v89, 4
    %v91 = vadd.f32 %v89, %v90
    %v92 = vrot.slane %v91, 2
    %v93 = vadd.f32 %v91, %v92
    %v94 = vrot.slane %v93, 1
    %v95 = vadd.f32 %v93, %v94
    %v96 = vsel %vm36, %v46, 0.0
    %v97 = vrot.slane %v96, 4
    %v98 = vadd.f32 %v96, %v97
    %v99 = vrot.slane %v98, 2
    %v100 = vadd.f32 %v98, %v99
    %v101 = vrot.slane %v100, 1
    %v102 = vadd.f32 %v100, %v101
    %v103 = vmul.f32 %v95, 0.0009765625
    %v104 = vmul.f32 %v102, 0.0009765625
    %v105 = vsub.f32 %v47, %v103
    %v106 = vsub.f32 %v48, %v104
    %v107 = vmul.f32 %v105, 256.0
    %v108 = vmul.f32 %v106, 256.0
    %v109 = vmul.f32 %v107, %v105
    %v110 = vmul.f32 %v108, %v106
    %v111 = vadd.f32 %v81, %v109
    %v112 = vadd.f32 %v86, %v110
    %v113 = vsel %vm36, %v111, 0.0
    %v114 = vrot.slane %v113, 4
    %v115 = vadd.f32 %v113, %v114
    %v116 = vrot.slane %v115, 2
    %v117 = vadd.f32 %v115, %v116
    %v118 = vrot.slane %v117, 1
    %v119 = vadd.f32 %v117, %v118
    %v120 = vsel %vm36, %v112, 0.0
    %v121 = vrot.slane %v120, 4
    %v122 = vadd.f32 %v120, %v121
    %v123 = vrot.slane %v122, 2
    %v124 = vadd.f32 %v122, %v123
    %v125 = vrot.slane %v124, 1
    %v126 = vadd.f32 %v124, %v125
    %v127 = vmul.f32 %v119, 0.0009775171
    %v128 = vmul.f32 %v126, 0.0009775171
    %v129 = vadd.f32 %v87, 1e-05
    %v130 = vadd.f32 %v88, 1e-05
    %v131 = vrsqrt.pop %v129
    %v132 = vrsqrt.pop %v130
    %v133 = vadd.f32 %v127, 1e-05
    %v134 = vadd.f32 %v128, 1e-05
    %v135 = vrsqrt.pop %v133
    %v136 = vrsqrt.pop %v134
    %v137 = vmul.f32 %v28, %v131
    %v138 = vmul.f32 %v29, %v132
    %v139 = vsub.f32 1.0, %v28
    %v140 = vsub.f32 1.0, %v29
    %v141 = vmul.f32 %v139, %v135
    %v142 = vmul.f32 %v140, %v136
    %v143 = vadd.f32 %v137, %v141
    %v144 = vadd.f32 %v138, %v142
    %147 = vrot.lane.b32.xlu0 %v143, 1
    %v148 = vpop.permute.xlu0 %147
    %149 = vrot.lane.b32.xlu0 %v144, 1
    %v150 = vpop.permute.xlu0 %149
    %v153 = vmul.f32 %v28, %v148
    %v154 = vmul.f32 %v29, %v150
    %v155 = vmul.f32 %v137, %v47
    %v156 = vmul.f32 %v138, %v48
    %v157 = vmul.f32 %v141, %v103
    %v158 = vmul.f32 %v142, %v104
    %v159 = vadd.f32 %v155, %v157
    %v160 = vadd.f32 %v156, %v158
    %163 = vrot.lane.b32.xlu0 %v159, 1
    %v164 = vpop.permute.xlu0 %163
    %165 = vrot.lane.b32.xlu0 %v160, 1
    %v166 = vpop.permute.xlu0 %165
    %v169 = vmul.f32 %v28, %v164
    %v170 = vmul.f32 %v29, %v166
    %173 = vrot.lane.b32.xlu0 %v169, 1
    %v174 = vpop.permute.xlu0 %173
    %175 = vrot.lane.b32.xlu0 %v170, 1
    %v176 = vpop.permute.xlu0 %175
    %v179 = vsub.f32 %v28, %v174
    %v180 = vsub.f32 %v29, %v176
    %182 = vset.pattern.permute.xlu0 1
    %183 = vperm.xlu0 %182, %v153
    %v184 = vpop.permute.xlu0 %183
    %186 = vset.pattern.permute.xlu0 1
    %187 = vperm.xlu0 %186, %v154
    %v188 = vpop.permute.xlu0 %187
    %v190 = vunpack.c.l.s4 839922192
    %v191 = vunpack.c.0.s8 %v190
    %v192 = vlaneseq
    %v193 = vshrl.u32 %v192, 7
    %v194 = vsub.s32 %v191, %v193
    %v195 = vrot.slane %v184, %v194
    %v197 = vunpack.c.l.s4 839922192
    %v198 = vunpack.c.0.s8 %v197
    %v199 = vlaneseq
    %v200 = vshrl.u32 %v199, 7
    %v201 = vsub.s32 %v198, %v200
    %v202 = vrot.slane %v188, %v201
    %v205 = vmul.f32 %v26, %v195
    %v206 = vmul.f32 %v27, %v202
    %208 = vset.pattern.permute.xlu0 2
    %209 = vperm.xlu0 %208, %v179
    %v210 = vpop.permute.xlu0 %209
    %212 = vset.pattern.permute.xlu0 2
    %213 = vperm.xlu0 %212, %v180
    %v214 = vpop.permute.xlu0 %213
    %v216 = vunpack.c.l.s4 839922192
    %v217 = vunpack.c.0.s8 %v216
    %v218 = vlaneseq
    %v219 = vshrl.u32 %v218, 7
    %v220 = vsub.s32 %v217, %v219
    %v221 = vrot.slane %v210, %v220
    %v223 = vunpack.c.l.s4 839922192
    %v224 = vunpack.c.0.s8 %v223
    %v225 = vlaneseq
    %v226 = vshrl.u32 %v225, 7
    %v227 = vsub.s32 %v224, %v226
    %v228 = vrot.slane %v214, %v227
    %v231 = vadd.f32 %v205, %v221
    %v232 = vadd.f32 %v206, %v228
    %233 = vst [vmem:[#allocation5] sm:$0xff] %v231
    %234 = vst [vmem:[#allocation5 + $0x8] sm:$0xff] %v232
    // Predicated region
    $region14: #{tpu_custom_call.1} parent=1 // pred_check
      _
    $region15: #{tpu_custom_call.1} parent=1 // pred_check_branch
      %236 = sbr.rel (0) target = $region17
    $region16: #{tpu_custom_call.1} parent=1 // pred_region
      %s238 = ssub.s32 256, 256
      %239 = vsyncadd [#allocation4], %s238
      %s240 = sshll.u32 [#allocation5], 4
      %s241 = int_to_ptr.vmem [resolvable:$true] %s240
      %246 = dma.vmem_to_hbm [thread:$0]  %s241, 256, %s2, [#allocation4], 128, 128, 8
    $region17: #{tpu_custom_call.1} parent=1 // pred_fallthru
      _
    // Predicated region
    $region18: #{tpu_custom_call.1} parent=1 // pred_check
      _
    $region19: #{tpu_custom_call.1} parent=1 // pred_check_branch
      %248 = sbr.rel (0) target = $region21
    $region20: #{tpu_custom_call.1} parent=1 // pred_region
      %249 = dma.done [#allocation4], 256
    $region21: #{tpu_custom_call.1} parent=1 // pred_fallthru
      _
    %250 = vsyncpa [#allocation3], 1
    %251 = vsyncpa [#allocation4], 1

</llo_original>
